<compile_context>
chip_gen: v7x
topology: tpu7x:2x2x1
jax: 0.10.0
libtpu: 0.0.40
codegen_flags: <defaults>
</compile_context>

<pallas_src>
import functools
import math

import jax
import jax.numpy as jnp
from jax import lax
from jax.experimental import pallas as pl
from jax.experimental.pallas import tpu as pltpu

EPS = 1e-5


def _pick_row_tile(r):
    """Largest convenient row tile that divides R (keeps tiles VMEM-friendly)."""
    for tr in (256, 512, 128, 64, 32, 16, 8):
        if r % tr == 0:
            return tr
    return r


# ----------------------------------------------------------------------------
# Kernel 1: partial per-channel sum / sum-of-squares of a (R, C) array.
# Each program handles one row tile and writes its own (8, C) partial-stat block
# (row 0 = sum, row 1 = sum of squares) -> grid axis stays "parallel".
# ----------------------------------------------------------------------------
def _stats_kernel(x_ref, st_ref):
    x = x_ref[...]                                            # (TR, C) f32
    st_ref[...] = jnp.zeros_like(st_ref)
    st_ref[0:1, :] = jnp.sum(x, axis=0, keepdims=True)
    st_ref[1:2, :] = jnp.sum(x * x, axis=0, keepdims=True)


def _partial_stats(x_flat, tr):
    R, C = x_flat.shape
    T = R // tr
    return pl.pallas_call(
        _stats_kernel,
        out_shape=jax.ShapeDtypeStruct((T, 8, C), jnp.float32),
        grid=(T,),
        in_specs=[pl.BlockSpec((tr, C), lambda i: (i, 0))],
        out_specs=pl.BlockSpec((None, 8, C), lambda i: (i, 0, 0)),
        compiler_params=pltpu.CompilerParams(dimension_semantics=("parallel",)),
    )(x_flat)


# ----------------------------------------------------------------------------
# Kernel 2: BN1 (precomputed scale/shift) -> ReLU -> 1x1 conv (matmul), and
# emit partial per-channel stats of h for BN2.  Row-tiled, parallel grid.
# ----------------------------------------------------------------------------
def _stage1_kernel(x_ref, scale1_ref, shift1_ref, w1_ref, h_ref, st_ref):
    xn = jnp.maximum(x_ref[...] * scale1_ref[...] + shift1_ref[...], 0.0)  # (TR, Cin)
    h = jnp.dot(xn, w1_ref[...], preferred_element_type=jnp.float32)       # (TR, C1)
    h_ref[...] = h
    st_ref[...] = jnp.zeros_like(st_ref)
    st_ref[0:1, :] = jnp.sum(h, axis=0, keepdims=True)
    st_ref[1:2, :] = jnp.sum(h * h, axis=0, keepdims=True)


def _stage1(x_flat, scale1, shift1, w1, tr):
    R, Cin = x_flat.shape
    C1 = w1.shape[1]
    T = R // tr
    return pl.pallas_call(
        _stage1_kernel,
        out_shape=(jax.ShapeDtypeStruct((R, C1), jnp.float32),
                   jax.ShapeDtypeStruct((T, 8, C1), jnp.float32)),
        grid=(T,),
        in_specs=[
            pl.BlockSpec((tr, Cin), lambda i: (i, 0)),
            pl.BlockSpec((1, Cin), lambda i: (0, 0)),     # constant -> loaded once
            pl.BlockSpec((1, Cin), lambda i: (0, 0)),
            pl.BlockSpec((Cin, C1), lambda i: (0, 0)),
        ],
        out_specs=(pl.BlockSpec((tr, C1), lambda i: (i, 0)),
                   pl.BlockSpec((None, 8, C1), lambda i: (i, 0, 0))),
        compiler_params=pltpu.CompilerParams(dimension_semantics=("parallel",)),
    )(x_flat, scale1, shift1, w1)


# ----------------------------------------------------------------------------
# Kernel 3: BN2 (precomputed scale/shift) -> ReLU -> 3x3 conv (pad=1) -> concat
# with x, all fused.  One image per program (whole-image tile); the zero padding
# lives in a VMEM halo scratch, the 9 taps are unrolled static matmuls with
# M = H*W rows, and the conv result + passthrough x are written directly into
# the concatenated NHWC output block (no jnp.pad / jnp.concatenate in glue).
# TODO(synk): tile over output rows inside the image if H*W*C1 ever outgrows VMEM.
# ----------------------------------------------------------------------------
def _conv_cat_kernel(h_ref, x_ref, scale2_ref, shift2_ref, w2_ref, o_ref, pad_ref,
                     *, H, W, C1, Cout):
    # BN2 + ReLU fused here (stats were finished before this kernel ran).
    a = jnp.maximum(h_ref[...] * scale2_ref[...] + shift2_ref[...], 0.0)   # (H, W, C1)

    # Zero-padded activation held in VMEM (halo = the conv's padding of 1).
    pad_ref[...] = jnp.zeros_like(pad_ref)
    pad_ref[1:H + 1, 1:W + 1, :] = a

    # 3x3 conv as 9 unrolled taps; one matmul per tap over the whole image.
    acc = jnp.zeros((H * W, Cout), jnp.float32)
    for dy in range(3):
        for dx in range(3):
            slab = pad_ref[dy:dy + H, dx:dx + W, :]                        # (H, W, C1)
            acc = acc + jnp.dot(slab.reshape(H * W, C1), w2_ref[dy, dx],
                                preferred_element_type=jnp.float32)

    # Fused concat: conv output in the low channels, passthrough x in the rest.
    o_ref[:, :, :Cout] = acc.reshape(H, W, Cout)
    o_ref[:, :, Cout:] = x_ref[...]


def _conv3x3_cat(h_nhwc, x_nhwc, scale2, shift2, w2):
    N, H, W, C1 = h_nhwc.shape
    Cin = x_nhwc.shape[-1]
    Cout = w2.shape[-1]
    Ctot = Cout + Cin
    kernel = functools.partial(_conv_cat_kernel, H=H, W=W, C1=C1, Cout=Cout)
    return pl.pallas_call(
        kernel,
        out_shape=jax.ShapeDtypeStruct((N, H, W, Ctot), jnp.float32),
        grid=(N,),
        in_specs=[
            pl.BlockSpec((None, H, W, C1), lambda n: (n, 0, 0, 0)),
            pl.BlockSpec((None, H, W, Cin), lambda n: (n, 0, 0, 0)),
            pl.BlockSpec((1, C1), lambda n: (0, 0)),          # constant -> loaded once
            pl.BlockSpec((1, C1), lambda n: (0, 0)),
            pl.BlockSpec((3, 3, C1, Cout), lambda n: (0, 0, 0, 0)),
        ],
        out_specs=pl.BlockSpec((None, H, W, Ctot), lambda n: (n, 0, 0, 0)),
        scratch_shapes=[pltpu.VMEM((H + 2, W + 2, C1), jnp.float32)],
        compiler_params=pltpu.CompilerParams(dimension_semantics=("parallel",)),
    )(h_nhwc, x_nhwc, scale2, shift2, w2)


# ----------------------------------------------------------------------------
# Full Bottleneck forward.  Wrapper glue = transposes/reshapes and the tiny
# (tiles, channels) stat finish (mean/var/rsqrt -> scale/shift).
# ----------------------------------------------------------------------------
def bottleneck_forward(x_nchw, params):
    g1, b1, w1, g2, b2, w2 = params
    N, Cin, H, W = x_nchw.shape
    C1 = w1.shape[1]
    R = N * H * W

    x_nhwc = jnp.transpose(x_nchw, (0, 2, 3, 1))              # NCHW -> NHWC
    x_flat = x_nhwc.reshape(R, Cin)
    tr = _pick_row_tile(R)

    # BN1 batch statistics (explicit cross-tile sum/sumsq reduction).
    st1 = _partial_stats(x_flat, tr)                          # (T, 8, Cin)
    s1 = jnp.sum(st1[:, 0, :], axis=0)
    ss1 = jnp.sum(st1[:, 1, :], axis=0)
    mean1 = s1 / R
    var1 = jnp.maximum(ss1 / R - mean1 * mean1, 0.0)          # biased variance
    scale1 = g1 * lax.rsqrt(var1 + EPS)
    shift1 = b1 - mean1 * scale1

    # BN1 -> ReLU -> 1x1 conv, plus partial BN2 statistics of h.
    h_flat, st2 = _stage1(x_flat, scale1.reshape(1, -1), shift1.reshape(1, -1),
                          w1, tr)                             # (R, C1), (T, 8, C1)
    s2 = jnp.sum(st2[:, 0, :], axis=0)
    ss2 = jnp.sum(st2[:, 1, :], axis=0)
    mean2 = s2 / R
    var2 = jnp.maximum(ss2 / R - mean2 * mean2, 0.0)
    scale2 = g2 * lax.rsqrt(var2 + EPS)
    shift2 = b2 - mean2 * scale2

    # BN2 -> ReLU -> 3x3 conv (pad fused) -> concat with x (fused).
    h_nhwc = h_flat.reshape(N, H, W, C1)
    cat_nhwc = _conv3x3_cat(h_nhwc, x_nhwc, scale2.reshape(1, -1),
                            shift2.reshape(1, -1), w2)        # (N, H, W, Cout+Cin)
    return jnp.transpose(cat_nhwc, (0, 3, 1, 2))              # back to NCHW


# ----------------------------------------------------------------------------
# Pure-JAX reference for verification (full f32 precision).
# ----------------------------------------------------------------------------
def reference_forward(x_nchw, params):
    g1, b1, w1, g2, b2, w2 = params
    x = jnp.transpose(x_nchw, (0, 2, 3, 1))

    def bn_relu(v, g, b):
        m = jnp.mean(v, axis=(0, 1, 2), keepdims=True)
        var = jnp.mean((v - m) ** 2, axis=(0, 1, 2), keepdims=True)
        return jnp.maximum((v - m) / jnp.sqrt(var + EPS) * g + b, 0.0)

    h = jnp.einsum("nhwc,cd->nhwd", bn_relu(x, g1, b1), w1,
                   precision=lax.Precision.HIGHEST)
    a = bn_relu(h, g2, b2)
    o = lax.conv_general_dilated(a, w2, (1, 1), ((1, 1), (1, 1)),
                                 dimension_numbers=("NHWC", "HWIO", "NHWC"),
                                 precision=lax.Precision.HIGHEST)
    cat = jnp.concatenate([o, x], axis=-1)
    return jnp.transpose(cat, (0, 3, 1, 2))


if __name__ == "__main__":
    # Small shapes consistent with the module: in_planes=4, growth_rate=4.
    N, Cin, H, W = 2, 4, 16, 16
    growth = 4
    C1 = 4 * growth        # 16
    Cout = growth          # 4

    key = jax.random.PRNGKey(0)
    k = jax.random.split(key, 7)
    gamma1 = 1.0 + 0.1 * jax.random.normal(k[0], (Cin,), jnp.float32)
    beta1 = 0.1 * jax.random.normal(k[1], (Cin,), jnp.float32)
    w1 = jax.random.normal(k[2], (Cin, C1), jnp.float32) / math.sqrt(Cin)
    gamma2 = 1.0 + 0.1 * jax.random.normal(k[3], (C1,), jnp.float32)
    beta2 = 0.1 * jax.random.normal(k[4], (C1,), jnp.float32)
    w2 = jax.random.normal(k[5], (3, 3, C1, Cout), jnp.float32) / math.sqrt(9 * C1)
    x = jax.random.normal(k[6], (N, Cin, H, W), jnp.float32)

    params = (gamma1, beta1, w1, gamma2, beta2, w2)

    out = jax.block_until_ready(bottleneck_forward(x, params))
    ref = jax.block_until_ready(reference_forward(x, params))

    assert out.shape == (N, Cout + Cin, H, W), out.shape
    # Kernels use default MXU precision (bf16 inputs, f32 accumulation);
    # reference is full f32, so allow a slightly wider tolerance.
    assert jnp.allclose(out, ref, rtol=2e-2, atol=2e-2), (
        "max abs diff = %g" % float(jnp.max(jnp.abs(out - ref))))

    print("KERNEL_OK")
</pallas_src>

<mosaic_0001>
module attributes {stable_mosaic.version = 11 : i64} {
  func.func @_stats_kernel(%arg0: i32, %arg1: memref<256x4xf32, #tpu.memory_space<vmem>>, %arg2: memref<1x8x4xf32, #tpu.memory_space<vmem>>) attributes {dimension_semantics = [#tpu.dimension_semantics<parallel>], iteration_bounds = array<i64: 2>, scalar_prefetch = 0 : i64, scratch_operands = 0 : i64, tpu.core_type = #tpu.core_type<tc>, window_params = [{transform_indices = @transform_0, window_bounds = array<i64: 256, 4>}, {transform_indices = @transform_1, window_bounds = array<i64: 1, 8, 4>}]} {
    %c0 = arith.constant 0 : index
    %c0_0 = arith.constant 0 : index
    %0 = vector.load %arg1[%c0, %c0_0] : memref<256x4xf32, #tpu.memory_space<vmem>>, vector<256x4xf32>
    %cst = arith.constant 0.000000e+00 : f32
    %1 = vector.broadcast %cst : f32 to vector<8x4xf32>
    %c0_1 = arith.constant 0 : index
    %c0_2 = arith.constant 0 : index
    %c0_3 = arith.constant 0 : index
    %2 = vector.load %arg2[%c0_1, %c0_2, %c0_3] : memref<1x8x4xf32, #tpu.memory_space<vmem>>, vector<1x8x4xf32>
    %3 = vector.shape_cast %2 : vector<1x8x4xf32> to vector<8x4xf32>
    %4 = vector.shape_cast %1 : vector<8x4xf32> to vector<1x8x4xf32>
    tpu.vector_store %arg2[%c0_1, %c0_2, %c0_3], %4 {strides = array<i32>} : memref<1x8x4xf32, #tpu.memory_space<vmem>>, vector<1x8x4xf32>,
    %cst_4 = arith.constant dense<0.000000e+00> : vector<4xf32>
    %5 = vector.multi_reduction <add>, %0, %cst_4 [0] : vector<256x4xf32> to vector<4xf32>
    %6 = vector.shape_cast %5 : vector<4xf32> to vector<1x4xf32>
    %c0_5 = arith.constant 0 : index
    %c0_6 = arith.constant 0 : index
    %c0_7 = arith.constant 0 : index
    %7 = vector.load %arg2[%c0_5, %c0_6, %c0_7] : memref<1x8x4xf32, #tpu.memory_space<vmem>>, vector<1x1x4xf32>
    %8 = vector.shape_cast %7 : vector<1x1x4xf32> to vector<1x4xf32>
    %9 = vector.shape_cast %6 : vector<1x4xf32> to vector<1x1x4xf32>
    tpu.vector_store %arg2[%c0_5, %c0_6, %c0_7], %9 {strides = array<i32>} : memref<1x8x4xf32, #tpu.memory_space<vmem>>, vector<1x1x4xf32>,
    %10 = arith.mulf %0, %0 : vector<256x4xf32>
    %cst_8 = arith.constant dense<0.000000e+00> : vector<4xf32>
    %11 = vector.multi_reduction <add>, %10, %cst_8 [0] : vector<256x4xf32> to vector<4xf32>
    %12 = vector.shape_cast %11 : vector<4xf32> to vector<1x4xf32>
    %c0_9 = arith.constant 0 : index
    %c1 = arith.constant 1 : index
    %c0_10 = arith.constant 0 : index
    %13 = vector.load %arg2[%c0_9, %c1, %c0_10] : memref<1x8x4xf32, #tpu.memory_space<vmem>>, vector<1x1x4xf32>
    %14 = vector.shape_cast %13 : vector<1x1x4xf32> to vector<1x4xf32>
    %15 = vector.shape_cast %12 : vector<1x4xf32> to vector<1x1x4xf32>
    tpu.vector_store %arg2[%c0_9, %c1, %c0_10], %15 {strides = array<i32>} : memref<1x8x4xf32, #tpu.memory_space<vmem>>, vector<1x1x4xf32>,
    return
  }
  func.func @transform_0(%arg0: i32) -> (i32, i32) {
    %c0_i32 = arith.constant 0 : i32
    %c0_i32_0 = arith.constant 0 : i32
    return %arg0, %c0_i32 : i32, i32
  }
  func.func @transform_1(%arg0: i32) -> (i32, i32, i32) {
    %c0_i32 = arith.constant 0 : i32
    %c0_i32_0 = arith.constant 0 : i32
    %c0_i32_1 = arith.constant 0 : i32
    return %arg0, %c0_i32, %c0_i32_0 : i32, i32, i32
  }
}

</mosaic_0001>

<llo_original>
// kernel: tpu_custom_call.1
$region0: #{tpu_custom_call.1}
  #allocation0 [shape = 'u32[]', space=smem, size = 0x4, offset = 0x4, fixed_abs, tag = 'smem constant byte address 0x4 - core index']
  #allocation1 [shape = 'u32[144,128]{1,0:T(1,128)}', space=vmem, size = 0x12000, scoped, tag = 'internal scratch']
  %s0 = inlined_call_operand.vmem [shape: f32[512,4], index: 0, kind: input, shape index: {}]
  %s1 = inlined_call_operand.vmem [shape: f32[2,8,4], index: 1, kind: output, shape index: {}]
  %s2 = sld [smem:[#allocation0]]
  $region37: #{tpu_custom_call.1} parent=0
    _
  %s4 = ssub.s32 1, %s2
  %s5 = scalar_select 0, %s4, %s2
  loop: start=0, step=1, limit=4
  $region2: #{tpu_custom_call.1} parent=0 // loop_pre_header
    _
  $region3: #{tpu_custom_call.1} parent=0 // loop_header
    %s7 = sphi 0, %s11
    %p8 = scmp.ge.s32.totalorder %s7, 4
    %s17 = sphi 0, %s19
    %s20 = sphi 0, %s17
    %s21 = sphi 0, %s20
    %s37 = sphi 0, %s21
    %s43 = sphi 0, %s45
    %s46 = sphi 0, %s43
    %s47 = sphi 0, %s46
    %s63 = sphi 0, %s47
  $region4: #{tpu_custom_call.1} parent=0 // loop_header_branch
    %10 = sbr.rel (%p8) target = $region8
  $region5: #{tpu_custom_call.1} parent=0 // loop_body
    %s12 = ssub.s32 %s7, 1
    %s13 = ssub.s32 %s7, 2
    %s14 = sadd.s32 %s7, 1
    %s15 = ssub.s32 %s7, %s14
    %p16 = scmp.eq.s32.totalorder %s15, 0
    %s18 = sadd.s32 %s17, 1
    %s19 = scalar_select %p16, %s17, %s18
    %p22 = pneg %p16
    %p23 = scmp.eq.s32.totalorder %s7, 1
    %p24 = por %p22, %p23
    %p25 = scmp.ne.s32.totalorder %s17, %s20
    %p26 = scmp.eq.s32.totalorder %s7, 0
    %p27 = por %p25, %p26
    %p28 = scmp.ne.s32.totalorder %s17, %s20
    %p29 = scmp.eq.s32.totalorder %s12, 1
    %p30 = por %p28, %p29
    %p31 = scmp.ne.s32.totalorder %s20, %s21
    %p32 = scmp.eq.s32.totalorder %s12, 0
    %p33 = por %p31, %p32
    %p34 = scmp.ne.s32.totalorder %s20, %s21
    %p35 = scmp.eq.s32.totalorder %s13, 1
    %p36 = por %p34, %p35
    %p38 = scmp.ne.s32.totalorder %s21, %s37
    %p39 = scmp.eq.s32.totalorder %s13, 0
    %p40 = por %p38, %p39
    %s41 = ssub.s32 %s7, %s14
    %p42 = scmp.eq.s32.totalorder %s41, 0
    %s44 = sadd.s32 %s43, 1
    %s45 = scalar_select %p42, %s43, %s44
    %p48 = pneg %p42
    %p49 = scmp.eq.s32.totalorder %s7, 1
    %p50 = por %p48, %p49
    %p51 = scmp.ne.s32.totalorder %s43, %s46
    %p52 = scmp.eq.s32.totalorder %s7, 0
    %p53 = por %p51, %p52
    %p54 = scmp.ne.s32.totalorder %s43, %s46
    %p55 = scmp.eq.s32.totalorder %s12, 1
    %p56 = por %p54, %p55
    %p57 = scmp.ne.s32.totalorder %s46, %s47
    %p58 = scmp.eq.s32.totalorder %s12, 0
    %p59 = por %p57, %p58
    %p60 = scmp.ne.s32.totalorder %s46, %s47
    %p61 = scmp.eq.s32.totalorder %s13, 1
    %p62 = por %p60, %p61
    %p64 = scmp.ne.s32.totalorder %s47, %s63
    %p65 = scmp.eq.s32.totalorder %s13, 0
    %p66 = por %p64, %p65
    %p67 = scmp.le.s32.totalorder 1, %s7
    %p68 = scmp.lt.s32.totalorder %s7, 3
    %p69 = pnand %p67, %p68
    %p70 = pneg %p69
    // Predicated region
    $region9: #{tpu_custom_call.1} parent=5 // pred_check
      _
    $region10: #{tpu_custom_call.1} parent=5 // pred_check_branch
      %72 = sbr.rel (%p69) target = $region12
    $region11: #{tpu_custom_call.1} parent=5 // pred_region
      %s73 = ssub.s32 %s7, 1
    $region12: #{tpu_custom_call.1} parent=5 // pred_fallthru
      _
    %p74 = scmp.lt.s32.totalorder %s7, 2
    // Predicated region
    $region13: #{tpu_custom_call.1} parent=5 // pred_check
      %p75 = pneg %p74
    $region14: #{tpu_custom_call.1} parent=5 // pred_check_branch
      %77 = sbr.rel (%p75) target = $region16
    $region15: #{tpu_custom_call.1} parent=5 // pred_region
      // Predicated region
      $region17: #{tpu_custom_call.1} parent=15 // pred_check
        %p78 = pneg %p27
      $region18: #{tpu_custom_call.1} parent=15 // pred_check_branch
        %80 = sbr.rel (%p78) target = $region20
      $region19: #{tpu_custom_call.1} parent=15 // pred_region
        %s81 = smul.u32 32, %s7
        %p82 = scmp.lt.s32.totalorder %s81, 63
        %s83 = scalar_select %p82, %s81, 63
        %s84 = smul.addr %s83, 8
        %s85 = scalar_lea.vmem %s0, %s84
        %s86 = smul.u32 32, %s7
      $region20: #{tpu_custom_call.1} parent=15 // pred_fallthru
        _
    $region16: #{tpu_custom_call.1} parent=5 // pred_fallthru
      _
    %p87 = scmp.le.s32.totalorder 1, %s7
    %p88 = scmp.lt.s32.totalorder %s7, 3
    %p89 = pnand %p87, %p88
    %p90 = pneg %p89
    // Predicated region
    $region21: #{tpu_custom_call.1} parent=5 // pred_check
      _
    $region22: #{tpu_custom_call.1} parent=5 // pred_check_branch
      %92 = sbr.rel (%p89) target = $region24
    $region23: #{tpu_custom_call.1} parent=5 // pred_region
      %s93 = ssub.s32 %s7, 1
      %s94 = smul.u32 32, %s12
      %p95 = scmp.lt.s32.totalorder %s94, 63
      %s96 = scalar_select %p95, %s94, 63
      %s97 = smul.addr %s96, 8
      %s98 = scalar_lea.vmem %s0, %s97
      %p99 = pneg %p33
      %p100 = pneg %p30
      %p101 = pneg %p59
      %p102 = pneg %p56
      %p103 = scmp.lt.s32.totalorder %s12, 1
      %s104 = scalar_select %p103, %s12, 1
      %s105 = smul.addr %s104, 8
      %s106 = scalar_lea.vmem %s1, %s105
      %s107 = smul.u32 32, %s12
      %p108 = scmp.lt.s32.totalorder %s107, 63
      %s109 = scalar_select %p108, %s107, 63
      %s110 = smul.addr %s109, 8
      %s111 = scalar_lea.vmem %s0, %s110
      %s112 = smul.u32 32, %s12
      %p113 = scmp.lt.s32.totalorder %s12, 1
      %s114 = scalar_select %p113, %s12, 1
      %s115 = smul.addr %s114, 8
      %s116 = scalar_lea.vmem %s1, %s115
      %v117 = vld [vmem:[%s111] sm:$0xff]
      %v118 = vld [vmem:[%s111 + $0x8] sm:$0xff]
      %v119 = vld [vmem:[%s111 + $0x10] sm:$0xff]
      %v120 = vld [vmem:[%s111 + $0x18] sm:$0xff]
      %v121 = vld [vmem:[%s111 + $0x20] sm:$0xff]
      %v122 = vld [vmem:[%s111 + $0x28] sm:$0xff]
      %v123 = vld [vmem:[%s111 + $0x30] sm:$0xff]
      %v124 = vld [vmem:[%s111 + $0x38] sm:$0xff]
      %v125 = vld [vmem:[%s111 + $0x40] sm:$0xff]
      %v126 = vld [vmem:[%s111 + $0x48] sm:$0xff]
      %v127 = vld [vmem:[%s111 + $0x50] sm:$0xff]
      %v128 = vld [vmem:[%s111 + $0x58] sm:$0xff]
      %v129 = vld [vmem:[%s111 + $0x60] sm:$0xff]
      %v130 = vld [vmem:[%s111 + $0x68] sm:$0xff]
      %v131 = vld [vmem:[%s111 + $0x70] sm:$0xff]
      %v132 = vld [vmem:[%s111 + $0x78] sm:$0xff]
      %v133 = vld [vmem:[%s111 + $0x80] sm:$0xff]
      %v134 = vld [vmem:[%s111 + $0x88] sm:$0xff]
      %v135 = vld [vmem:[%s111 + $0x90] sm:$0xff]
      %v136 = vld [vmem:[%s111 + $0x98] sm:$0xff]
      %v137 = vld [vmem:[%s111 + $0xa0] sm:$0xff]
      %v138 = vld [vmem:[%s111 + $0xa8] sm:$0xff]
      %v139 = vld [vmem:[%s111 + $0xb0] sm:$0xff]
      %v140 = vld [vmem:[%s111 + $0xb8] sm:$0xff]
      %v141 = vld [vmem:[%s111 + $0xc0] sm:$0xff]
      %v142 = vld [vmem:[%s111 + $0xc8] sm:$0xff]
      %v143 = vld [vmem:[%s111 + $0xd0] sm:$0xff]
      %v144 = vld [vmem:[%s111 + $0xd8] sm:$0xff]
      %v145 = vld [vmem:[%s111 + $0xe0] sm:$0xff]
      %v146 = vld [vmem:[%s111 + $0xe8] sm:$0xff]
      %v147 = vld [vmem:[%s111 + $0xf0] sm:$0xff]
      %v148 = vld [vmem:[%s111 + $0xf8] sm:$0xff]
      %vm149 = vcmask 31744
      %150 = vst.msk [vmem:[%s116] sm:$0xff] %vm149, 0.0
      %v151 = vsel %vm149, %v117, 0.0
      %v152 = vsel %vm149, %v118, 0.0
      %v153 = vadd.f32 %v151, %v152
      %v154 = vsel %vm149, %v119, 0.0
      %v155 = vadd.f32 %v153, %v154
      %v156 = vsel %vm149, %v120, 0.0
      %v157 = vadd.f32 %v155, %v156
      %v158 = vsel %vm149, %v121, 0.0
      %v159 = vadd.f32 %v157, %v158
      %v160 = vsel %vm149, %v122, 0.0
      %v161 = vadd.f32 %v159, %v160
      %v162 = vsel %vm149, %v123, 0.0
      %v163 = vadd.f32 %v161, %v162
      %v164 = vsel %vm149, %v124, 0.0
      %v165 = vadd.f32 %v163, %v164
      %v166 = vsel %vm149, %v125, 0.0
      %v167 = vadd.f32 %v165, %v166
      %v168 = vsel %vm149, %v126, 0.0
      %v169 = vadd.f32 %v167, %v168
      %v170 = vsel %vm149, %v127, 0.0
      %v171 = vadd.f32 %v169, %v170
      %v172 = vsel %vm149, %v128, 0.0
      %v173 = vadd.f32 %v171, %v172
      %v174 = vsel %vm149, %v129, 0.0
      %v175 = vadd.f32 %v173, %v174
      %v176 = vsel %vm149, %v130, 0.0
      %v177 = vadd.f32 %v175, %v176
      %v178 = vsel %vm149, %v131, 0.0
      %v179 = vadd.f32 %v177, %v178
      %v180 = vsel %vm149, %v132, 0.0
      %v181 = vadd.f32 %v179, %v180
      %v182 = vsel %vm149, %v133, 0.0
      %v183 = vadd.f32 %v181, %v182
      %v184 = vsel %vm149, %v134, 0.0
      %v185 = vadd.f32 %v183, %v184
      %v186 = vsel %vm149, %v135, 0.0
      %v187 = vadd.f32 %v185, %v186
      %v188 = vsel %vm149, %v136, 0.0
      %v189 = vadd.f32 %v187, %v188
      %v190 = vsel %vm149, %v137, 0.0
      %v191 = vadd.f32 %v189, %v190
      %v192 = vsel %vm149, %v138, 0.0
      %v193 = vadd.f32 %v191, %v192
      %v194 = vsel %vm149, %v139, 0.0
      %v195 = vadd.f32 %v193, %v194
      %v196 = vsel %vm149, %v140, 0.0
      %v197 = vadd.f32 %v195, %v196
      %v198 = vsel %vm149, %v141, 0.0
      %v199 = vadd.f32 %v197, %v198
      %v200 = vsel %vm149, %v142, 0.0
      %v201 = vadd.f32 %v199, %v200
      %v202 = vsel %vm149, %v143, 0.0
      %v203 = vadd.f32 %v201, %v202
      %v204 = vsel %vm149, %v144, 0.0
      %v205 = vadd.f32 %v203, %v204
      %v206 = vsel %vm149, %v145, 0.0
      %v207 = vadd.f32 %v205, %v206
      %v208 = vsel %vm149, %v146, 0.0
      %v209 = vadd.f32 %v207, %v208
      %v210 = vsel %vm149, %v147, 0.0
      %v211 = vadd.f32 %v209, %v210
      %v212 = vsel %vm149, %v148, 0.0
      %v213 = vadd.f32 %v211, %v212
      %v214 = vrot.slane %v213, 4
      %v215 = vadd.f32 %v213, %v214
      %v216 = vrot.slane %v215, 2
      %v217 = vadd.f32 %v215, %v216
      %v218 = vrot.slane %v217, 1
      %v219 = vadd.f32 %v217, %v218
      %vm220 = vcmask 24576
      %221 = vst.msk [vmem:[%s116] sm:$0x1] %vm220, %v219
      %v222 = vmul.f32 %v117, %v117
      %v223 = vmul.f32 %v118, %v118
      %v224 = vmul.f32 %v119, %v119
      %v225 = vmul.f32 %v120, %v120
      %v226 = vmul.f32 %v121, %v121
      %v227 = vmul.f32 %v122, %v122
      %v228 = vmul.f32 %v123, %v123
      %v229 = vmul.f32 %v124, %v124
      %v230 = vmul.f32 %v125, %v125
      %v231 = vmul.f32 %v126, %v126
      %v232 = vmul.f32 %v127, %v127
      %v233 = vmul.f32 %v128, %v128
      %v234 = vmul.f32 %v129, %v129
      %v235 = vmul.f32 %v130, %v130
      %v236 = vmul.f32 %v131, %v131
      %v237 = vmul.f32 %v132, %v132
      %v238 = vmul.f32 %v133, %v133
      %v239 = vmul.f32 %v134, %v134
      %v240 = vmul.f32 %v135, %v135
      %v241 = vmul.f32 %v136, %v136
      %v242 = vmul.f32 %v137, %v137
      %v243 = vmul.f32 %v138, %v138
      %v244 = vmul.f32 %v139, %v139
      %v245 = vmul.f32 %v140, %v140
      %v246 = vmul.f32 %v141, %v141
      %v247 = vmul.f32 %v142, %v142
      %v248 = vmul.f32 %v143, %v143
      %v249 = vmul.f32 %v144, %v144
      %v250 = vmul.f32 %v145, %v145
      %v251 = vmul.f32 %v146, %v146
      %v252 = vmul.f32 %v147, %v147
      %v253 = vmul.f32 %v148, %v148
      %v254 = vsel %vm149, %v222, 0.0
      %v255 = vsel %vm149, %v223, 0.0
      %v256 = vadd.f32 %v254, %v255
      %v257 = vsel %vm149, %v224, 0.0
      %v258 = vadd.f32 %v256, %v257
      %v259 = vsel %vm149, %v225, 0.0
      %v260 = vadd.f32 %v258, %v259
      %v261 = vsel %vm149, %v226, 0.0
      %v262 = vadd.f32 %v260, %v261
      %v263 = vsel %vm149, %v227, 0.0
      %v264 = vadd.f32 %v262, %v263
      %v265 = vsel %vm149, %v228, 0.0
      %v266 = vadd.f32 %v264, %v265
      %v267 = vsel %vm149, %v229, 0.0
      %v268 = vadd.f32 %v266, %v267
      %v269 = vsel %vm149, %v230, 0.0
      %v270 = vadd.f32 %v268, %v269
      %v271 = vsel %vm149, %v231, 0.0
      %v272 = vadd.f32 %v270, %v271
      %v273 = vsel %vm149, %v232, 0.0
      %v274 = vadd.f32 %v272, %v273
      %v275 = vsel %vm149, %v233, 0.0
      %v276 = vadd.f32 %v274, %v275
      %v277 = vsel %vm149, %v234, 0.0
      %v278 = vadd.f32 %v276, %v277
      %v279 = vsel %vm149, %v235, 0.0
      %v280 = vadd.f32 %v278, %v279
      %v281 = vsel %vm149, %v236, 0.0
      %v282 = vadd.f32 %v280, %v281
      %v283 = vsel %vm149, %v237, 0.0
      %v284 = vadd.f32 %v282, %v283
      %v285 = vsel %vm149, %v238, 0.0
      %v286 = vadd.f32 %v284, %v285
      %v287 = vsel %vm149, %v239, 0.0
      %v288 = vadd.f32 %v286, %v287
      %v289 = vsel %vm149, %v240, 0.0
      %v290 = vadd.f32 %v288, %v289
      %v291 = vsel %vm149, %v241, 0.0
      %v292 = vadd.f32 %v290, %v291
      %v293 = vsel %vm149, %v242, 0.0
      %v294 = vadd.f32 %v292, %v293
      %v295 = vsel %vm149, %v243, 0.0
      %v296 = vadd.f32 %v294, %v295
      %v297 = vsel %vm149, %v244, 0.0
      %v298 = vadd.f32 %v296, %v297
      %v299 = vsel %vm149, %v245, 0.0
      %v300 = vadd.f32 %v298, %v299
      %v301 = vsel %vm149, %v246, 0.0
      %v302 = vadd.f32 %v300, %v301
      %v303 = vsel %vm149, %v247, 0.0
      %v304 = vadd.f32 %v302, %v303
      %v305 = vsel %vm149, %v248, 0.0
      %v306 = vadd.f32 %v304, %v305
      %v307 = vsel %vm149, %v249, 0.0
      %v308 = vadd.f32 %v306, %v307
      %v309 = vsel %vm149, %v250, 0.0
      %v310 = vadd.f32 %v308, %v309
      %v311 = vsel %vm149, %v251, 0.0
      %v312 = vadd.f32 %v310, %v311
      %v313 = vsel %vm149, %v252, 0.0
      %v314 = vadd.f32 %v312, %v313
      %v315 = vsel %vm149, %v253, 0.0
      %v316 = vadd.f32 %v314, %v315
      %v317 = vrot.slane %v316, 4
      %v318 = vadd.f32 %v316, %v317
      %v319 = vrot.slane %v318, 2
      %v320 = vadd.f32 %v318, %v319
      %v321 = vrot.slane %v320, 1
      %v322 = vadd.f32 %v320, %v321
      %323 = vst.msk [vmem:[%s116 + $0x1] sm:$0x1] %vm220, %v322
      %p324 = scmp.lt.s32.totalorder %s12, 1
      %s325 = scalar_select %p324, %s12, 1
      %s326 = smul.addr %s325, 8
      %s327 = scalar_lea.vmem %s1, %s326
      // Predicated region
      $region25: #{tpu_custom_call.1} parent=23 // pred_check
        %p328 = pneg %p56
      $region26: #{tpu_custom_call.1} parent=23 // pred_check_branch
        %330 = sbr.rel (%p328) target = $region28
      $region27: #{tpu_custom_call.1} parent=23 // pred_region
        _
      $region28: #{tpu_custom_call.1} parent=23 // pred_fallthru
        _
    $region24: #{tpu_custom_call.1} parent=5 // pred_fallthru
      _
    %p331 = scmp.le.s32.totalorder 2, %s7
    // Predicated region
    $region29: #{tpu_custom_call.1} parent=5 // pred_check
      %p332 = pneg %p331
    $region30: #{tpu_custom_call.1} parent=5 // pred_check_branch
      %334 = sbr.rel (%p332) target = $region32
    $region31: #{tpu_custom_call.1} parent=5 // pred_region
      %s335 = ssub.s32 %s7, 2
      // Predicated region
      $region33: #{tpu_custom_call.1} parent=31 // pred_check
        %p336 = pneg %p62
      $region34: #{tpu_custom_call.1} parent=31 // pred_check_branch
        %338 = sbr.rel (%p336) target = $region36
      $region35: #{tpu_custom_call.1} parent=31 // pred_region
        %p339 = scmp.lt.s32.totalorder %s13, 1
        %s340 = scalar_select %p339, %s13, 1
        %s341 = smul.addr %s340, 8
        %s342 = scalar_lea.vmem %s1, %s341
      $region36: #{tpu_custom_call.1} parent=31 // pred_fallthru
        _
    $region32: #{tpu_custom_call.1} parent=5 // pred_fallthru
      _
  $region6: #{tpu_custom_call.1} parent=0 // loop_footer
    %s11 = sadd.s32 1, %s7
  $region7: #{tpu_custom_call.1} parent=0 // loop_footer_branch
    %6 = sbr.rel target = $region3
  $region8: #{tpu_custom_call.1} parent=0 // loop_exit
    _

</llo_original>
